<compile_context>
chip_gen: v5e
topology: v5e:2x2
jax: 0.10.0
libtpu: 0.0.40
codegen_flags: <defaults>
</compile_context>

<pallas_src>
import jax
import jax.numpy as jnp
from jax.experimental import pallas as pl
from jax.experimental.pallas import tpu as pltpu

LANE = 128     # TPU lane width -> lane-dense output padding target
SUBLANE = 8    # sublane granularity for the batch tile


def _round_up(x, m):
    return (x + m - 1) // m * m


def dqn_kernel(x_ref, w1_ref, b1_ref, w2_ref, b2_ref, o_ref):
    # fc1: bf16 MXU inputs, f32 accumulation; bias + ReLU in f32.
    h = jnp.dot(x_ref[...], w1_ref[...], preferred_element_type=jnp.float32)
    h = jnp.maximum(h + b1_ref[...], 0.0)          # b1 is (1, H) -> broadcasts
    # fc2: cast the f32 intermediate back to bf16 for the MXU, accumulate f32.
    y = jnp.dot(h.astype(w2_ref.dtype), w2_ref[...],
                preferred_element_type=jnp.float32)
    y = y + b2_ref[...]                            # b2 is (1, O_pad)
    o_ref[...] = y.astype(o_ref.dtype)


def dqn_forward(x, w1, b1, w2, b2, *, block_b=128):
    """Forward of `dqn`: relu(x @ w1 + b1) @ w2 + b2.

    x : [B, D] float32
    w1: [D, H], b1: [H]   (fc1, stored transposed vs. nn.Linear.weight)
    w2: [H, O], b2: [O]   (fc2, stored transposed)
    returns [B, O] float32
    """
    B, D = x.shape
    H = w1.shape[1]
    O = w2.shape[1]

    # --- batch tiling: pick TB (multiple of 8, capped at block_b) and pad B
    tb = min(block_b, _round_up(max(B, 1), SUBLANE))
    b_pad = _round_up(B, tb)
    if b_pad != B:
        x = jnp.pad(x, ((0, b_pad - B), (0, 0)))

    # --- lane-dense output: pad O to a multiple of 128 (zero columns of w2/b2)
    o_pad = _round_up(O, LANE)
    if o_pad != O:
        w2 = jnp.pad(w2, ((0, 0), (0, o_pad - O)))
        b2 = jnp.pad(b2, ((0, o_pad - O),))

    # bf16 inputs for the MXU; accumulation stays f32 inside the kernel.
    x_bf = x.astype(jnp.bfloat16)
    w1_bf = w1.astype(jnp.bfloat16)
    w2_bf = w2.astype(jnp.bfloat16)
    b1_2d = b1.reshape(1, H).astype(jnp.float32)
    b2_2d = b2.reshape(1, o_pad).astype(jnp.float32)

    grid = (b_pad // tb,)

    out = pl.pallas_call(
        dqn_kernel,
        out_shape=jax.ShapeDtypeStruct((b_pad, o_pad), jnp.float32),
        grid_spec=pltpu.PrefetchScalarGridSpec(
            num_scalar_prefetch=0,
            grid=grid,
            in_specs=[
                pl.BlockSpec((tb, D), lambda i: (i, 0)),       # streamed x tile
                pl.BlockSpec((D, H), lambda i: (0, 0)),        # resident weights
                pl.BlockSpec((1, H), lambda i: (0, 0)),
                pl.BlockSpec((H, o_pad), lambda i: (0, 0)),
                pl.BlockSpec((1, o_pad), lambda i: (0, 0)),
            ],
            out_specs=pl.BlockSpec((tb, o_pad), lambda i: (i, 0)),
        ),
        compiler_params=pltpu.CompilerParams(
            # batch axis is embarrassingly parallel -> sharded across the
            # 2 TensorCores on v7x; free on v5e/v6e.
            dimension_semantics=("parallel",),
            # explicit headroom so large TB sweeps don't hit the 16 MiB
            # v5e scoped-VMEM default.
            vmem_limit_bytes=64 << 20,
        ),
    )(x_bf, w1_bf, b1_2d, w2_bf, b2_2d)

    # Strip batch padding and the lane padding of the output dimension.
    return out[:B, :O]


def init_params(key, input_dim, hidden_dim, output_dim, dtype=jnp.float32):
    """Deterministic init mirroring nn.Linear's shapes (stored transposed)."""
    k1, k2, k3, k4 = jax.random.split(key, 4)
    # PyTorch nn.Linear default: U(-1/sqrt(fan_in), 1/sqrt(fan_in))
    lim1 = 1.0 / (input_dim ** 0.5)
    lim2 = 1.0 / (hidden_dim ** 0.5)
    w1 = jax.random.uniform(k1, (input_dim, hidden_dim), dtype, -lim1, lim1)
    b1 = jax.random.uniform(k2, (hidden_dim,), dtype, -lim1, lim1)
    w2 = jax.random.uniform(k3, (hidden_dim, output_dim), dtype, -lim2, lim2)
    b2 = jax.random.uniform(k4, (output_dim,), dtype, -lim2, lim2)
    return w1, b1, w2, b2


if __name__ == "__main__":
    # Small shapes consistent with the module: input_dim=32, hidden=256, output_dim=16
    B, D, H, O = 8, 32, 256, 16
    key = jax.random.PRNGKey(0)
    kx, kp = jax.random.split(key)
    x = jax.random.normal(kx, (B, D), jnp.float32)
    w1, b1, w2, b2 = init_params(kp, D, H, O)

    out = dqn_forward(x, w1, b1, w2, b2)
    out = jax.block_until_ready(out)
    assert out.shape == (B, O)

    # Pure-JAX reference emulating the kernel's bf16-input / f32-accumulate math.
    xb = x.astype(jnp.bfloat16).astype(jnp.float32)
    w1b = w1.astype(jnp.bfloat16).astype(jnp.float32)
    w2b = w2.astype(jnp.bfloat16).astype(jnp.float32)
    h_ref = jnp.maximum(xb @ w1b + b1, 0.0)
    ref = h_ref.astype(jnp.bfloat16).astype(jnp.float32) @ w2b + b2
    assert jnp.allclose(out, ref, atol=5e-3, rtol=5e-3), (
        float(jnp.max(jnp.abs(out - ref))))

    # Also sanity-check against the pure-f32 reference (looser tolerance for bf16).
    ref_f32 = jnp.maximum(x @ w1 + b1, 0.0) @ w2 + b2
    assert jnp.allclose(out, ref_f32, atol=3e-2, rtol=3e-2)

    print("KERNEL_OK")
</pallas_src>

<mosaic_0001>
module attributes {stable_mosaic.version = 11 : i64} {
  func.func @dqn_kernel(%arg0: i32, %arg1: memref<8x32xbf16, #tpu.memory_space<vmem>>, %arg2: memref<32x256xbf16, #tpu.memory_space<vmem>>, %arg3: memref<1x256xf32, #tpu.memory_space<vmem>>, %arg4: memref<256x128xbf16, #tpu.memory_space<vmem>>, %arg5: memref<1x128xf32, #tpu.memory_space<vmem>>, %arg6: memref<8x128xf32, #tpu.memory_space<vmem>>) attributes {dimension_semantics = [#tpu.dimension_semantics<parallel>], iteration_bounds = array<i64: 1>, scalar_prefetch = 0 : i64, scratch_operands = 0 : i64, tpu.core_type = #tpu.core_type<tc>, window_params = [{transform_indices = @transform_0, window_bounds = array<i64: 8, 32>}, {pipeline_mode = #tpu.pipeline_mode<synchronous>, transform_indices = @transform_1, window_bounds = array<i64: 32, 256>}, {pipeline_mode = #tpu.pipeline_mode<synchronous>, transform_indices = @transform_2, window_bounds = array<i64: 1, 256>}, {pipeline_mode = #tpu.pipeline_mode<synchronous>, transform_indices = @transform_3, window_bounds = array<i64: 256, 128>}, {pipeline_mode = #tpu.pipeline_mode<synchronous>, transform_indices = @transform_4, window_bounds = array<i64: 1, 128>}, {transform_indices = @transform_5, window_bounds = array<i64: 8, 128>}]} {
    %c0 = arith.constant 0 : index
    %c0_0 = arith.constant 0 : index
    %0 = vector.load %arg1[%c0, %c0_0] : memref<8x32xbf16, #tpu.memory_space<vmem>>, vector<8x32xbf16>
    %c0_1 = arith.constant 0 : index
    %c0_2 = arith.constant 0 : index
    %1 = vector.load %arg2[%c0_1, %c0_2] : memref<32x256xbf16, #tpu.memory_space<vmem>>, vector<32x256xbf16>
    %cst = arith.constant dense<0.000000e+00> : vector<8x256xf32>
    %2 = tpu.matmul %0, %1, %cst {dimension_numbers = #tpu.dot_dimension_numbers<[1], [0], [0], [1], [0, 0, 1, 1], [], []>} : vector<8x32xbf16>, vector<32x256xbf16>, vector<8x256xf32> -> vector<8x256xf32>
    %c0_3 = arith.constant 0 : index
    %c0_4 = arith.constant 0 : index
    %3 = vector.load %arg3[%c0_3, %c0_4] : memref<1x256xf32, #tpu.memory_space<vmem>>, vector<1x256xf32>
    %4 = vector.broadcast %3 : vector<1x256xf32> to vector<8x256xf32>
    %5 = arith.addf %2, %4 : vector<8x256xf32>
    %cst_5 = arith.constant 0.000000e+00 : f32
    %6 = vector.broadcast %cst_5 : f32 to vector<8x256xf32>
    %7 = arith.maximumf %5, %6 : vector<8x256xf32>
    %8 = arith.truncf %7 : vector<8x256xf32> to vector<8x256xbf16>
    %c0_6 = arith.constant 0 : index
    %c0_7 = arith.constant 0 : index
    %9 = vector.load %arg4[%c0_6, %c0_7] : memref<256x128xbf16, #tpu.memory_space<vmem>>, vector<256x128xbf16>
    %cst_8 = arith.constant dense<0.000000e+00> : vector<8x128xf32>
    %10 = tpu.matmul %8, %9, %cst_8 {dimension_numbers = #tpu.dot_dimension_numbers<[1], [0], [0], [1], [0, 0, 1, 1], [], []>} : vector<8x256xbf16>, vector<256x128xbf16>, vector<8x128xf32> -> vector<8x128xf32>
    %c0_9 = arith.constant 0 : index
    %c0_10 = arith.constant 0 : index
    %11 = vector.load %arg5[%c0_9, %c0_10] : memref<1x128xf32, #tpu.memory_space<vmem>>, vector<1x128xf32>
    %12 = vector.broadcast %11 : vector<1x128xf32> to vector<8x128xf32>
    %13 = arith.addf %10, %12 : vector<8x128xf32>
    %c0_11 = arith.constant 0 : index
    %c0_12 = arith.constant 0 : index
    %14 = vector.load %arg6[%c0_11, %c0_12] : memref<8x128xf32, #tpu.memory_space<vmem>>, vector<8x128xf32>
    tpu.vector_store %arg6[%c0_11, %c0_12], %13 {strides = array<i32>} : memref<8x128xf32, #tpu.memory_space<vmem>>, vector<8x128xf32>,
    return
  }
  func.func @transform_0(%arg0: i32) -> (i32, i32) {
    %c0_i32 = arith.constant 0 : i32
    %c0_i32_0 = arith.constant 0 : i32
    return %arg0, %c0_i32 : i32, i32
  }
  func.func @transform_1(%arg0: i32) -> (i32, i32) {
    %c0_i32 = arith.constant 0 : i32
    %c0_i32_0 = arith.constant 0 : i32
    %c0_i32_1 = arith.constant 0 : i32
    return %c0_i32, %c0_i32_0 : i32, i32
  }
  func.func @transform_2(%arg0: i32) -> (i32, i32) {
    %c0_i32 = arith.constant 0 : i32
    %c0_i32_0 = arith.constant 0 : i32
    %c0_i32_1 = arith.constant 0 : i32
    return %c0_i32, %c0_i32_0 : i32, i32
  }
  func.func @transform_3(%arg0: i32) -> (i32, i32) {
    %c0_i32 = arith.constant 0 : i32
    %c0_i32_0 = arith.constant 0 : i32
    %c0_i32_1 = arith.constant 0 : i32
    return %c0_i32, %c0_i32_0 : i32, i32
  }
  func.func @transform_4(%arg0: i32) -> (i32, i32) {
    %c0_i32 = arith.constant 0 : i32
    %c0_i32_0 = arith.constant 0 : i32
    %c0_i32_1 = arith.constant 0 : i32
    return %c0_i32, %c0_i32_0 : i32, i32
  }
  func.func @transform_5(%arg0: i32) -> (i32, i32) {
    %c0_i32 = arith.constant 0 : i32
    %c0_i32_0 = arith.constant 0 : i32
    return %arg0, %c0_i32 : i32, i32
  }
}

</mosaic_0001>

<llo_original>
// kernel: tpu_custom_call.1
$region0: #{tpu_custom_call.1}
  #allocation0 [shape = 'u32[]', space=smem, size = 0x4, offset = 0x4, fixed_abs, tag = 'smem constant byte address 0x4 - core index']
  #allocation1 [shape = 'u32[72,128]{1,0:T(1,128)}', space=vmem, size = 0x9000, scoped, tag = 'internal scratch']
  %s0 = inlined_call_operand.hbm [shape: bf16[8,32], index: 0, kind: input, shape index: {}]
  %s1 = inlined_call_operand.hbm [shape: bf16[32,256], index: 1, kind: input, shape index: {}]
  %s2 = inlined_call_operand.hbm [shape: f32[1,256], index: 2, kind: input, shape index: {}]
  %s3 = inlined_call_operand.hbm [shape: bf16[256,128], index: 3, kind: input, shape index: {}]
  %s4 = inlined_call_operand.vmem [shape: f32[1,128], index: 4, kind: input, shape index: {}]
  %s5 = inlined_call_operand.hbm [shape: f32[8,128], index: 5, kind: output, shape index: {}]
  %s6 = sld [smem:[#allocation0]]
  $region46: #{tpu_custom_call.1} parent=0
    _
  %s8 = ssub.s32 1, %s6
  %s9 = scalar_select 0, %s8, %s6
  $region1: #{tpu_custom_call.1} parent=0
    #allocation2 [shape = 'u8[2048]{0}', space=vmem, size = 0x800, scoped, tag = 'input window, operand 0, single buffered']
    #allocation3 [shape = 's32[1]{0}', space=sflag, size = 0x4, scoped, tag = 'scoped memory for tpu_custom_call.1']
    #allocation4 [shape = 's32[1]{0}', space=sflag, size = 0x4, scoped, tag = 'scoped memory for tpu_custom_call.1']
    #allocation5 [shape = 'u8[16384]{0}', space=vmem, size = 0x4000, scoped, tag = 'input window, operand 1, single buffered']
    #allocation6 [shape = 's32[1]{0}', space=sflag, size = 0x4, scoped, tag = 'scoped memory for tpu_custom_call.1']
    #allocation7 [shape = 'u8[1024]{0}', space=vmem, size = 0x400, scoped, tag = 'input window, operand 2, single buffered']
    #allocation8 [shape = 'u8[65536]{0}', space=vmem, size = 0x10000, scoped, tag = 'input window, operand 3, single buffered']
    #allocation9 [shape = 's32[1]{0}', space=sflag, size = 0x4, scoped, tag = 'scoped memory for tpu_custom_call.1']
    #allocation10 [shape = 'u8[4096]{0}', space=vmem, size = 0x1000, scoped, tag = 'output window, operand 0, single buffered']
    %10 = vsyncpa [#allocation3], 0
    %11 = vsyncpa [#allocation6], 0
    %12 = vsyncpa [#allocation9], 0
    %13 = vsyncpa [#allocation4], 0
    // Predicated region
    $region2: #{tpu_custom_call.1} parent=1 // pred_check
      _
    $region3: #{tpu_custom_call.1} parent=1 // pred_check_branch
      %15 = sbr.rel (0) target = $region5
    $region4: #{tpu_custom_call.1} parent=1 // pred_region
      %17 = vsyncadd [#allocation3], 0
      %s19 = sshll.u32 %s0, 4
      %s20 = int_to_ptr.hbm [resolvable:$true] %s19
      %s21 = sshll.u32 [#allocation2], 4
      %s22 = int_to_ptr.vmem [resolvable:$true] %s21
      %24 = dma.hbm_to_vmem [thread:$0]  %s20, 64, %s22, [#allocation3]
    $region5: #{tpu_custom_call.1} parent=1 // pred_fallthru
      _
    // Predicated region
    $region6: #{tpu_custom_call.1} parent=1 // pred_check
      _
    $region7: #{tpu_custom_call.1} parent=1 // pred_check_branch
      %26 = sbr.rel (0) target = $region9
    $region8: #{tpu_custom_call.1} parent=1 // pred_region
      %28 = vsyncadd [#allocation6], 0
      %s29 = sshll.u32 %s1, 4
      %s30 = int_to_ptr.hbm [resolvable:$true] %s29
      %s31 = sshll.u32 [#allocation5], 4
      %s32 = int_to_ptr.vmem [resolvable:$true] %s31
      %37 = dma.hbm_to_vmem [thread:$0]  %s30, 512, %s32, [#allocation6], 128, 128, 8
    $region9: #{tpu_custom_call.1} parent=1 // pred_fallthru
      _
    // Predicated region
    $region10: #{tpu_custom_call.1} parent=1 // pred_check
      _
    $region11: #{tpu_custom_call.1} parent=1 // pred_check_branch
      %39 = sbr.rel (0) target = $region13
    $region12: #{tpu_custom_call.1} parent=1 // pred_region
      %41 = vsyncadd [#allocation6], 0
      %s43 = sshll.u32 %s2, 4
      %s44 = int_to_ptr.hbm [resolvable:$true] %s43
      %s45 = sshll.u32 [#allocation7], 4
      %s46 = int_to_ptr.vmem [resolvable:$true] %s45
      %48 = dma.hbm_to_vmem [thread:$0]  %s44, 32, %s46, [#allocation6]
    $region13: #{tpu_custom_call.1} parent=1 // pred_fallthru
      _
    // Predicated region
    $region14: #{tpu_custom_call.1} parent=1 // pred_check
      _
    $region15: #{tpu_custom_call.1} parent=1 // pred_check_branch
      %50 = sbr.rel (0) target = $region17
    $region16: #{tpu_custom_call.1} parent=1 // pred_region
      %52 = vsyncadd [#allocation9], 0
      %s53 = sshll.u32 %s3, 4
      %s54 = int_to_ptr.hbm [resolvable:$true] %s53
      %s55 = sshll.u32 [#allocation8], 4
      %s56 = int_to_ptr.vmem [resolvable:$true] %s55
      %61 = dma.hbm_to_vmem [thread:$0]  %s54, 2048, %s56, [#allocation9], 64, 64, 4
    $region17: #{tpu_custom_call.1} parent=1 // pred_fallthru
      _
    // Predicated region
    $region18: #{tpu_custom_call.1} parent=1 // pred_check
      _
    $region19: #{tpu_custom_call.1} parent=1 // pred_check_branch
      %63 = sbr.rel (0) target = $region21
    $region20: #{tpu_custom_call.1} parent=1 // pred_region
      _
    $region21: #{tpu_custom_call.1} parent=1 // pred_fallthru
      _
    // Predicated region
    $region22: #{tpu_custom_call.1} parent=1 // pred_check
      _
    $region23: #{tpu_custom_call.1} parent=1 // pred_check_branch
      %65 = sbr.rel (0) target = $region25
    $region24: #{tpu_custom_call.1} parent=1 // pred_region
      %67 = dma.done [#allocation3], 64
    $region25: #{tpu_custom_call.1} parent=1 // pred_fallthru
      _
    // Predicated region
    $region26: #{tpu_custom_call.1} parent=1 // pred_check
      _
    $region27: #{tpu_custom_call.1} parent=1 // pred_check_branch
      %69 = sbr.rel (0) target = $region29
    $region28: #{tpu_custom_call.1} parent=1 // pred_region
      %71 = dma.done [#allocation6], 512
    $region29: #{tpu_custom_call.1} parent=1 // pred_fallthru
      _
    // Predicated region
    $region30: #{tpu_custom_call.1} parent=1 // pred_check
      _
    $region31: #{tpu_custom_call.1} parent=1 // pred_check_branch
      %73 = sbr.rel (0) target = $region33
    $region32: #{tpu_custom_call.1} parent=1 // pred_region
      %75 = dma.done [#allocation6], 32
    $region33: #{tpu_custom_call.1} parent=1 // pred_fallthru
      _
    // Predicated region
    $region34: #{tpu_custom_call.1} parent=1 // pred_check
      _
    $region35: #{tpu_custom_call.1} parent=1 // pred_check_branch
      %77 = sbr.rel (0) target = $region37
    $region36: #{tpu_custom_call.1} parent=1 // pred_region
      %79 = dma.done [#allocation9], 2048
    $region37: #{tpu_custom_call.1} parent=1 // pred_fallthru
      _
    %v81 = vld [vmem:[#allocation2] sm:$0xf]
    %v82 = vld [vmem:[#allocation5] sm:$0xff]
    %v83 = vld [vmem:[#allocation5 + $0x8] sm:$0xff]
    %v84 = vld [vmem:[#allocation5 + $0x10] sm:$0xff]
    %v85 = vld [vmem:[#allocation5 + $0x18] sm:$0xff]
    %v86 = vld [vmem:[#allocation7] sm:$0x3]
    %v88 = vperm.slane %v86, 0
    %v89 = vperm.slane %v86, 1
    %v96 = vunpack.c.l.b16 %v82
    %v97 = vunpack.c.h.b16 %v82
    %v98 = vunpack.c.l.b16 %v83
    %v99 = vunpack.c.h.b16 %v83
    %v100 = vunpack.c.l.b16 %v84
    %v101 = vunpack.c.h.b16 %v84
    %v102 = vunpack.c.l.b16 %v85
    %v103 = vunpack.c.h.b16 %v85
    %v104 = vpack.c.b16 %v98, %v96
    %v105 = vpack.c.b16 %v99, %v97
    %v106 = vpack.c.b16 %v102, %v100
    %v107 = vpack.c.b16 %v103, %v101
    %vm112 = vcmask 261120
    %v114 = vsel %vm112, %v81, 0
    %116 = vmatpush.bf16.msra.mxu0 0
    %117 = vmatpush.bf16.msra.mxu0 0
    %118 = vmatpush.bf16.msra.mxu0 0
    %119 = vmatpush.bf16.msra.mxu0 0
    %120 = vmatpush.bf16.msra.mxu0 0
    %121 = vmatpush.bf16.msra.mxu0 0
    %122 = vmatpush.bf16.msra.mxu0 %v106
    %123 = vmatpush.bf16.msra.mxu0 %v104
    %124 = vmatmul.bf16.gmra.mxu0 %v114
    %v125 = vpop.f32.mrf.mxu0
    %v126 = vadd.f32 %v88, %v125
    %v127 = vpop.f32.mrf.mxu0
    %128 = vdwg.mxu0
    %129 = vmatpush.bf16.msra.mxu0 0
    %130 = vmatpush.bf16.msra.mxu0 0
    %131 = vmatpush.bf16.msra.mxu0 0
    %132 = vmatpush.bf16.msra.mxu0 0
    %133 = vmatpush.bf16.msra.mxu0 0
    %134 = vmatpush.bf16.msra.mxu0 0
    %135 = vmatpush.bf16.msra.mxu0 %v107
    %136 = vmatpush.bf16.msra.mxu0 %v105
    %137 = vmatmul.bf16.gmra.mxu0 %v114
    %v138 = vpop.f32.mrf.mxu0
    %v139 = vadd.f32 %v89, %v138
    %v140 = vpop.f32.mrf.mxu0
    %141 = vdwg.mxu0
    %v142 = vmax.f32 %v126, 0.0
    %v143 = vmax.f32 %v139, 0.0
    %v144 = vpack.c.bf16 %v142, %v142
    %v145 = vpack.c.bf16 %v143, %v143
    %v146 = vld [vmem:[#allocation8] sm:$0xf]
    %v147 = vld [vmem:[#allocation8 + $0x4] sm:$0xf]
    %v148 = vld [vmem:[#allocation8 + $0x8] sm:$0xf]
    %v149 = vld [vmem:[#allocation8 + $0xc] sm:$0xf]
    %v150 = vld [vmem:[#allocation8 + $0x10] sm:$0xf]
    %v151 = vld [vmem:[#allocation8 + $0x14] sm:$0xf]
    %v152 = vld [vmem:[#allocation8 + $0x18] sm:$0xf]
    %v153 = vld [vmem:[#allocation8 + $0x1c] sm:$0xf]
    %v154 = vld [vmem:[#allocation8 + $0x20] sm:$0xf]
    %v155 = vld [vmem:[#allocation8 + $0x24] sm:$0xf]
    %v156 = vld [vmem:[#allocation8 + $0x28] sm:$0xf]
    %v157 = vld [vmem:[#allocation8 + $0x2c] sm:$0xf]
    %v158 = vld [vmem:[#allocation8 + $0x30] sm:$0xf]
    %v159 = vld [vmem:[#allocation8 + $0x34] sm:$0xf]
    %v160 = vld [vmem:[#allocation8 + $0x38] sm:$0xf]
    %v161 = vld [vmem:[#allocation8 + $0x3c] sm:$0xf]
    %v162 = vld [vmem:[#allocation8 + $0x40] sm:$0xf]
    %v163 = vld [vmem:[#allocation8 + $0x44] sm:$0xf]
    %v164 = vld [vmem:[#allocation8 + $0x48] sm:$0xf]
    %v165 = vld [vmem:[#allocation8 + $0x4c] sm:$0xf]
    %v166 = vld [vmem:[#allocation8 + $0x50] sm:$0xf]
    %v167 = vld [vmem:[#allocation8 + $0x54] sm:$0xf]
    %v168 = vld [vmem:[#allocation8 + $0x58] sm:$0xf]
    %v169 = vld [vmem:[#allocation8 + $0x5c] sm:$0xf]
    %v170 = vld [vmem:[#allocation8 + $0x60] sm:$0xf]
    %v171 = vld [vmem:[#allocation8 + $0x64] sm:$0xf]
    %v172 = vld [vmem:[#allocation8 + $0x68] sm:$0xf]
    %v173 = vld [vmem:[#allocation8 + $0x6c] sm:$0xf]
    %v174 = vld [vmem:[#allocation8 + $0x70] sm:$0xf]
    %v175 = vld [vmem:[#allocation8 + $0x74] sm:$0xf]
    %v176 = vld [vmem:[#allocation8 + $0x78] sm:$0xf]
    %v177 = vld [vmem:[#allocation8 + $0x7c] sm:$0xf]
    %v178 = vld [vmem:[%s4] sm:$0x1]
    %v180 = vperm.slane %v178, 0
    %v214 = vunpack.c.l.b16 %v146
    %v215 = vunpack.c.l.b16 %v147
    %v216 = vunpack.c.l.b16 %v148
    %v217 = vunpack.c.l.b16 %v149
    %v218 = vunpack.c.l.b16 %v150
    %v219 = vunpack.c.l.b16 %v151
    %v220 = vunpack.c.l.b16 %v152
    %v221 = vunpack.c.l.b16 %v153
    %v222 = vunpack.c.l.b16 %v154
    %v223 = vunpack.c.l.b16 %v155
    %v224 = vunpack.c.l.b16 %v156
    %v225 = vunpack.c.l.b16 %v157
    %v226 = vunpack.c.l.b16 %v158
    %v227 = vunpack.c.l.b16 %v159
    %v228 = vunpack.c.l.b16 %v160
    %v229 = vunpack.c.l.b16 %v161
    %v230 = vunpack.c.l.b16 %v162
    %v231 = vunpack.c.l.b16 %v163
    %v232 = vunpack.c.l.b16 %v164
    %v233 = vunpack.c.l.b16 %v165
    %v234 = vunpack.c.l.b16 %v166
    %v235 = vunpack.c.l.b16 %v167
    %v236 = vunpack.c.l.b16 %v168
    %v237 = vunpack.c.l.b16 %v169
    %v238 = vunpack.c.l.b16 %v170
    %v239 = vunpack.c.l.b16 %v171
    %v240 = vunpack.c.l.b16 %v172
    %v241 = vunpack.c.l.b16 %v173
    %v242 = vunpack.c.l.b16 %v174
    %v243 = vunpack.c.l.b16 %v175
    %v244 = vunpack.c.l.b16 %v176
    %v245 = vunpack.c.l.b16 %v177
    %v246 = vpack.c.b16 %v215, %v214
    %v247 = vpack.c.b16 %v217, %v216
    %v248 = vpack.c.b16 %v219, %v218
    %v249 = vpack.c.b16 %v221, %v220
    %v250 = vpack.c.b16 %v223, %v222
    %v251 = vpack.c.b16 %v225, %v224
    %v252 = vpack.c.b16 %v227, %v226
    %v253 = vpack.c.b16 %v229, %v228
    %v254 = vpack.c.b16 %v231, %v230
    %v255 = vpack.c.b16 %v233, %v232
    %v256 = vpack.c.b16 %v235, %v234
    %v257 = vpack.c.b16 %v237, %v236
    %v258 = vpack.c.b16 %v239, %v238
    %v259 = vpack.c.b16 %v241, %v240
    %v260 = vpack.c.b16 %v243, %v242
    %v261 = vpack.c.b16 %v245, %v244
    %278 = vmatpush.bf16.msra.mxu0 %v253
    %279 = vmatpush.bf16.msra.mxu0 %v252
    %280 = vmatpush.bf16.msra.mxu0 %v251
    %281 = vmatpush.bf16.msra.mxu0 %v250
    %282 = vmatpush.bf16.msra.mxu0 %v249
    %283 = vmatpush.bf16.msra.mxu0 %v248
    %284 = vmatpush.bf16.msra.mxu0 %v247
    %285 = vmatpush.bf16.msra.mxu0 %v246
    %286 = vmatmul.bf16.gmra.mxu0 %v144
    %v287 = vpop.f32.mrf.mxu0
    %v288 = vadd.f32 %v180, %v287
    %v289 = vpop.f32.mrf.mxu0
    %290 = vdwg.mxu0
    %291 = vmatpush.bf16.msra.mxu0 %v261
    %292 = vmatpush.bf16.msra.mxu0 %v260
    %293 = vmatpush.bf16.msra.mxu0 %v259
    %294 = vmatpush.bf16.msra.mxu0 %v258
    %295 = vmatpush.bf16.msra.mxu0 %v257
    %296 = vmatpush.bf16.msra.mxu0 %v256
    %297 = vmatpush.bf16.msra.mxu0 %v255
    %298 = vmatpush.bf16.msra.mxu0 %v254
    %299 = vmatmul.bf16.gmra.mxu0 %v145
    %v300 = vpop.f32.mrf.mxu0
    %v301 = vadd.f32 %v288, %v300
    %v302 = vpop.f32.mrf.mxu0
    %303 = vdwg.mxu0
    %304 = vst [vmem:[#allocation10] sm:$0xff] %v301
    // Predicated region
    $region38: #{tpu_custom_call.1} parent=1 // pred_check
      _
    $region39: #{tpu_custom_call.1} parent=1 // pred_check_branch
      %306 = sbr.rel (0) target = $region41
    $region40: #{tpu_custom_call.1} parent=1 // pred_region
      %308 = vsyncadd [#allocation4], 0
      %s310 = sshll.u32 [#allocation10], 4
      %s311 = int_to_ptr.vmem [resolvable:$true] %s310
      %s312 = sshll.u32 %s5, 4
      %s313 = int_to_ptr.hbm [resolvable:$true] %s312
      %315 = dma.vmem_to_hbm [thread:$0]  %s311, 128, %s313, [#allocation4]
    $region41: #{tpu_custom_call.1} parent=1 // pred_fallthru
      _
    // Predicated region
    $region42: #{tpu_custom_call.1} parent=1 // pred_check
      _
    $region43: #{tpu_custom_call.1} parent=1 // pred_check_branch
      %317 = sbr.rel (0) target = $region45
    $region44: #{tpu_custom_call.1} parent=1 // pred_region
      %319 = dma.done [#allocation4], 128
    $region45: #{tpu_custom_call.1} parent=1 // pred_fallthru
      _
    %320 = vsyncpa [#allocation3], 1
    %321 = vsyncpa [#allocation6], 1
    %322 = vsyncpa [#allocation9], 1
    %323 = vsyncpa [#allocation4], 1

</llo_original>
